<compile_context>
chip_gen: v7x
topology: tpu7x:2x2x1
jax: 0.10.0
libtpu: 0.0.40
codegen_flags: <defaults>
</compile_context>

<pallas_src>
import functools

import jax
import jax.numpy as jnp
from jax import lax
from jax.experimental import pallas as pl
from jax.experimental.pallas import tpu as pltpu


def _make_ela_kernel(NB, C, CR, HW):
    """ELA kernel over a block of NB batch elements, each a (C, H*W) plane."""

    def kernel(x_ref, w1_ref, b1_ref, w2_ref, b2_ref, mavg_ref, mmax_ref,
               bsp_ref, o_ref):
        # x_ref / o_ref : (NB, C, HW) in VMEM
        # w1 (CR,C), b1 (CR,1), w2 (C,CR), b2 (C,1) in VMEM
        # mavg / mmax (HW, HW) spatial-conv matrices in VMEM
        # bsp (1,) scalar in SMEM
        w1 = w1_ref[...]
        b1 = b1_ref[...]
        w2 = w2_ref[...]
        b2 = b2_ref[...]

        # ---- 1x1 channel-compress conv (+ folded BN) + ReLU : MXU ----------
        comps, sums, maxs = [], [], []
        for b in range(NB):
            xb = x_ref[b].astype(jnp.float32)                       # (C, HW)
            comp = jnp.dot(w1, xb, preferred_element_type=jnp.float32)
            comp = jnp.maximum(comp + b1, 0.0)                       # (CR, HW)
            comps.append(comp)
            sums.append(jnp.sum(comp, axis=0, keepdims=True))        # (1, HW)
            maxs.append(jnp.max(comp, axis=0, keepdims=True))        # (1, HW)
        s_sum = sums[0] if NB == 1 else jnp.concatenate(sums, axis=0)
        s_max = maxs[0] if NB == 1 else jnp.concatenate(maxs, axis=0)

        # ---- KxK spatial conv as two MXU matmuls (spatial weights, zero
        # ---- padding and the 1/CR mean factor folded into mavg/mmax) -------
        conv = (jnp.dot(s_sum, mavg_ref[...], preferred_element_type=jnp.float32)
                + jnp.dot(s_max, mmax_ref[...], preferred_element_type=jnp.float32)
                + bsp_ref[0])
        spat = jax.nn.sigmoid(conv)                                   # (NB, HW)

        # ---- attend, 1x1 channel-expand conv (+ folded BN), gate -----------
        for b in range(NB):
            att = comps[b] * spat[b:b + 1, :]                         # (CR, HW)
            expand = jnp.dot(w2, att, preferred_element_type=jnp.float32)
            gate = jax.nn.sigmoid(expand + b2)                        # (C, HW)
            xb = x_ref[b].astype(jnp.float32)                         # re-read
            o_ref[b] = (xb * gate).astype(o_ref.dtype)

    return kernel


def _build_conv_matrix(w, H, W, K):
    """(HW, HW) matrix M with  stat_flat @ M == conv2d(stat, w, pad=K//2)."""
    P = K // 2
    HW = H * W
    idx = jnp.arange(HW, dtype=jnp.int32)
    yp, xp = idx // W, idx % W
    M = jnp.zeros((HW, HW), jnp.float32)
    for dy in range(K):
        for dx in range(K):
            ys = yp + (dy - P)
            xs = xp + (dx - P)
            valid = (ys >= 0) & (ys < H) & (xs >= 0) & (xs < W)
            src = jnp.clip(ys, 0, H - 1) * W + jnp.clip(xs, 0, W - 1)
            M = M.at[src, idx].add(jnp.where(valid, w[dy, dx], 0.0))
    return M


def _pick_batch_block(N):
    """Largest divisor of N that is <= min(8, N // 2); keeps grid >= 2."""
    cap = min(8, max(1, N // 2))
    for d in range(cap, 0, -1):
        if N % d == 0:
            return d
    return 1


@functools.partial(jax.jit, static_argnums=2)
def ela_forward(x, params, kernel_size):
    N, C, H, W = x.shape
    w1, b1, wsp, bsp, w2, b2 = params
    CR = b1.shape[0]
    K = kernel_size
    HW = H * W

    # Conv-matrix path is only sensible for small feature maps (O(HW^2)).
    assert 2 * HW * HW * 4 <= 8 * 1024 * 1024, (
        "TODO(synk): roll-based spatial conv needed for large H*W")

    NB = _pick_batch_block(N)
    GB = N // NB

    # Fold spatial-conv weights, zero padding and 1/CR (mean) into matrices.
    wsp2 = wsp.reshape(2, K, K)
    m_avg = _build_conv_matrix(wsp2[0] / CR, H, W, K)   # (HW, HW)
    m_max = _build_conv_matrix(wsp2[1], H, W, K)        # (HW, HW)

    x_flat = x.reshape(N, C, HW)          # lane-dense: last dim = H*W
    b1c = b1.reshape(CR, 1)
    b2c = b2.reshape(C, 1)

    kernel = _make_ela_kernel(NB, C, CR, HW)
    smem = pl.BlockSpec(memory_space=pltpu.MemorySpace.SMEM)

    cost = pl.CostEstimate(
        flops=int(N * HW * (2 * CR * C + 4 * HW + 2 * C * CR)),
        transcendentals=int(N * HW * (1 + C)),
        bytes_accessed=int(4 * (2 * N * C * HW + 2 * HW * HW
                                + 2 * CR * C + CR + C + 1)),
    )

    out_flat = pl.pallas_call(
        kernel,
        out_shape=jax.ShapeDtypeStruct((N, C, HW), x.dtype),
        grid=(GB,),
        in_specs=[
            pl.BlockSpec((NB, C, HW), lambda g: (g, 0, 0)),       # x
            pl.BlockSpec((CR, C), lambda g: (0, 0)),              # w1
            pl.BlockSpec((CR, 1), lambda g: (0, 0)),              # b1
            pl.BlockSpec((C, CR), lambda g: (0, 0)),              # w2
            pl.BlockSpec((C, 1), lambda g: (0, 0)),               # b2
            pl.BlockSpec((HW, HW), lambda g: (0, 0)),             # m_avg
            pl.BlockSpec((HW, HW), lambda g: (0, 0)),             # m_max
            smem,                                                 # bsp
        ],
        out_specs=pl.BlockSpec((NB, C, HW), lambda g: (g, 0, 0)),
        compiler_params=pltpu.CompilerParams(
            dimension_semantics=("parallel",)),
        cost_estimate=cost,
    )(x_flat, w1, b1c, w2, b2c, m_avg, m_max, bsp)
    return out_flat.reshape(N, C, H, W)


def init_params(key, in_channels, reduction=16, kernel_size=7):
    """Deterministic synthetic parameters; BN folded to scale/bias (eval mode)."""
    C, CR, K = in_channels, in_channels // reduction, kernel_size
    eps = 1e-5
    ks = jax.random.split(key, 15)

    w_compress = jax.random.normal(ks[0], (CR, C), jnp.float32) * 0.1
    w_spatial = jax.random.normal(ks[1], (2, K, K), jnp.float32) * 0.1
    w_expand = jax.random.normal(ks[2], (C, CR), jnp.float32) * 0.1

    def bn_fold(kg, kb, km, kv, n):
        gamma = 1.0 + 0.1 * jax.random.normal(kg, (n,), jnp.float32)
        beta = 0.1 * jax.random.normal(kb, (n,), jnp.float32)
        mean = 0.1 * jax.random.normal(km, (n,), jnp.float32)
        var = 1.0 + 0.1 * jnp.abs(jax.random.normal(kv, (n,), jnp.float32))
        scale = gamma / jnp.sqrt(var + eps)
        bias = beta - mean * scale
        return scale, bias

    s1, bias1 = bn_fold(ks[3], ks[4], ks[5], ks[6], CR)
    s2, bias2 = bn_fold(ks[7], ks[8], ks[9], ks[10], 1)
    s3, bias3 = bn_fold(ks[11], ks[12], ks[13], ks[14], C)

    w1_eff = w_compress * s1[:, None]                  # (CR, C)
    wsp_eff = (w_spatial * s2[0]).reshape(-1)          # (2*K*K,)
    w2_eff = w_expand * s3[:, None]                    # (C, CR)
    return (w1_eff, bias1, wsp_eff, bias2, w2_eff, bias3)


def ela_reference(x, params, kernel_size):
    """Pure-JAX reference of the ELA forward (eval-mode BN, folded)."""
    w1, b1, wsp, bsp, w2, b2 = params
    N, C, H, W = x.shape
    K = kernel_size

    comp = jnp.einsum('nchw,rc->nrhw', x, w1) + b1[None, :, None, None]
    comp = jnp.maximum(comp, 0.0)
    avg = jnp.mean(comp, axis=1, keepdims=True)
    mx = jnp.max(comp, axis=1, keepdims=True)
    stat = jnp.concatenate([avg, mx], axis=1)
    conv = lax.conv_general_dilated(
        stat, wsp.reshape(1, 2, K, K), window_strides=(1, 1),
        padding=[(K // 2, K // 2), (K // 2, K // 2)],
        dimension_numbers=('NCHW', 'OIHW', 'NCHW')) + bsp[0]
    spat = jax.nn.sigmoid(conv)
    att = comp * spat
    exp_ = jnp.einsum('nrhw,cr->nchw', att, w2) + b2[None, :, None, None]
    return x * jax.nn.sigmoid(exp_)


if __name__ == "__main__":
    key = jax.random.PRNGKey(0)
    kx, kp = jax.random.split(key)

    N, C, H, W = 2, 32, 16, 16            # in_channels=32, reduction=16 -> CR=2
    reduction, kernel_size = 16, 7

    x = jax.random.normal(kx, (N, C, H, W), jnp.float32)
    params = init_params(kp, C, reduction, kernel_size)

    out = ela_forward(x, params, kernel_size)
    out = jax.block_until_ready(out)

    ref = ela_reference(x, params, kernel_size)
    err = float(jnp.max(jnp.abs(out - ref)))
    assert out.shape == x.shape and out.dtype == x.dtype
    if err < 1e-3:
        print("KERNEL_OK")
    else:
        print(f"MISMATCH max_abs_err={err}")
</pallas_src>

<mosaic_0001>
module attributes {stable_mosaic.version = 11 : i64} {
  func.func private @main(%arg0: i32) attributes {dimension_semantics = [#tpu.dimension_semantics<core_parallel>], iteration_bounds = array<i64: 2>, tpu.core_type = #tpu.core_type<sc_scalar_subcore>, window_params = []} {
    return
  }
}

module attributes {stable_mosaic.version = 11 : i64} {
  func.func private @main(%arg0: i32) attributes {dimension_semantics = [#tpu.dimension_semantics<core_parallel>], iteration_bounds = array<i64: 2>, tpu.core_type = #tpu.core_type<sc_scalar_subcore>, window_params = []} {
    return
  }
}

module attributes {stable_mosaic.version = 11 : i64} {
  func.func @kernel(%arg0: i32, %arg1: memref<1x32x256xf32, #tpu.memory_space<vmem>>, %arg2: memref<2x32xf32, #tpu.memory_space<vmem>>, %arg3: memref<2x1xf32, #tpu.memory_space<vmem>>, %arg4: memref<32x2xf32, #tpu.memory_space<vmem>>, %arg5: memref<32x1xf32, #tpu.memory_space<vmem>>, %arg6: memref<256x256xf32, #tpu.memory_space<vmem>>, %arg7: memref<256x256xf32, #tpu.memory_space<vmem>>, %arg8: memref<1xf32, #tpu.memory_space<smem>>, %arg9: memref<1x32x256xf32, #tpu.memory_space<vmem>>) attributes {dimension_semantics = [#tpu.dimension_semantics<parallel>], iteration_bounds = array<i64: 2>, scalar_prefetch = 0 : i64, scratch_operands = 0 : i64, tpu.core_type = #tpu.core_type<tc>, window_params = [{transform_indices = @transform_0, window_bounds = array<i64: 1, 32, 256>}, {pipeline_mode = #tpu.pipeline_mode<synchronous>, transform_indices = @transform_1, window_bounds = array<i64: 2, 32>}, {pipeline_mode = #tpu.pipeline_mode<synchronous>, transform_indices = @transform_2, window_bounds = array<i64: 2, 1>}, {pipeline_mode = #tpu.pipeline_mode<synchronous>, transform_indices = @transform_3, window_bounds = array<i64: 32, 2>}, {pipeline_mode = #tpu.pipeline_mode<synchronous>, transform_indices = @transform_4, window_bounds = array<i64: 32, 1>}, {pipeline_mode = #tpu.pipeline_mode<synchronous>, transform_indices = @transform_5, window_bounds = array<i64: 256, 256>}, {pipeline_mode = #tpu.pipeline_mode<synchronous>, transform_indices = @transform_6, window_bounds = array<i64: 256, 256>}, {transform_indices = @transform_7, window_bounds = array<i64: 1>}, {transform_indices = @transform_8, window_bounds = array<i64: 1, 32, 256>}]} {
    %c0 = arith.constant 0 : index
    %c0_0 = arith.constant 0 : index
    %0 = vector.load %arg2[%c0, %c0_0] : memref<2x32xf32, #tpu.memory_space<vmem>>, vector<2x32xf32>
    %c0_1 = arith.constant 0 : index
    %c0_2 = arith.constant 0 : index
    %1 = vector.load %arg3[%c0_1, %c0_2] : memref<2x1xf32, #tpu.memory_space<vmem>>, vector<2x1xf32>
    %c0_3 = arith.constant 0 : index
    %c0_4 = arith.constant 0 : index
    %2 = vector.load %arg4[%c0_3, %c0_4] : memref<32x2xf32, #tpu.memory_space<vmem>>, vector<32x2xf32>
    %c0_5 = arith.constant 0 : index
    %c0_6 = arith.constant 0 : index
    %3 = vector.load %arg5[%c0_5, %c0_6] : memref<32x1xf32, #tpu.memory_space<vmem>>, vector<32x1xf32>
    %c0_7 = arith.constant 0 : index
    %c0_8 = arith.constant 0 : index
    %c0_9 = arith.constant 0 : index
    %4 = vector.load %arg1[%c0_7, %c0_8, %c0_9] : memref<1x32x256xf32, #tpu.memory_space<vmem>>, vector<1x32x256xf32>
    %5 = vector.shape_cast %4 : vector<1x32x256xf32> to vector<32x256xf32>
    %cst = arith.constant dense<0.000000e+00> : vector<2x256xf32>
    %6 = tpu.matmul %0, %5, %cst {dimension_numbers = #tpu.dot_dimension_numbers<[1], [0], [0], [1], [0, 0, 1, 1], [], []>} : vector<2x32xf32>, vector<32x256xf32>, vector<2x256xf32> -> vector<2x256xf32>
    %7 = vector.broadcast %1 : vector<2x1xf32> to vector<2x256xf32>
    %8 = arith.addf %6, %7 : vector<2x256xf32>
    %cst_10 = arith.constant 0.000000e+00 : f32
    %9 = vector.broadcast %cst_10 : f32 to vector<2x256xf32>
    %10 = arith.maximumf %8, %9 : vector<2x256xf32>
    %cst_11 = arith.constant dense<0.000000e+00> : vector<256xf32>
    %11 = vector.multi_reduction <add>, %10, %cst_11 [0] : vector<2x256xf32> to vector<256xf32>
    %12 = vector.shape_cast %11 : vector<256xf32> to vector<1x256xf32>
    %cst_12 = arith.constant dense<0xFF800000> : vector<256xf32>
    %13 = vector.multi_reduction <maximumf>, %10, %cst_12 [0] : vector<2x256xf32> to vector<256xf32>
    %14 = vector.shape_cast %13 : vector<256xf32> to vector<1x256xf32>
    %c0_13 = arith.constant 0 : index
    %c0_14 = arith.constant 0 : index
    %15 = vector.load %arg6[%c0_13, %c0_14] : memref<256x256xf32, #tpu.memory_space<vmem>>, vector<256x256xf32>
    %cst_15 = arith.constant dense<0.000000e+00> : vector<1x256xf32>
    %16 = tpu.matmul %12, %15, %cst_15 {dimension_numbers = #tpu.dot_dimension_numbers<[1], [0], [0], [1], [0, 0, 1, 1], [], []>} : vector<1x256xf32>, vector<256x256xf32>, vector<1x256xf32> -> vector<1x256xf32>
    %c0_16 = arith.constant 0 : index
    %c0_17 = arith.constant 0 : index
    %17 = vector.load %arg7[%c0_16, %c0_17] : memref<256x256xf32, #tpu.memory_space<vmem>>, vector<256x256xf32>
    %cst_18 = arith.constant dense<0.000000e+00> : vector<1x256xf32>
    %18 = tpu.matmul %14, %17, %cst_18 {dimension_numbers = #tpu.dot_dimension_numbers<[1], [0], [0], [1], [0, 0, 1, 1], [], []>} : vector<1x256xf32>, vector<256x256xf32>, vector<1x256xf32> -> vector<1x256xf32>
    %19 = arith.addf %16, %18 : vector<1x256xf32>
    %c0_19 = arith.constant 0 : index
    %20 = memref.load %arg8[%c0_19] : memref<1xf32, #tpu.memory_space<smem>>
    %21 = vector.broadcast %20 : f32 to vector<1x256xf32>
    %22 = arith.addf %19, %21 : vector<1x256xf32>
    %23 = arith.negf %22 : vector<1x256xf32>
    %24 = math.exp %23 : vector<1x256xf32>
    %cst_20 = arith.constant 1.000000e+00 : f32
    %25 = vector.broadcast %cst_20 : f32 to vector<1x256xf32>
    %26 = arith.addf %25, %24 : vector<1x256xf32>
    %27 = arith.divf %25, %26 : vector<1x256xf32>
    %28 = vector.broadcast %27 : vector<1x256xf32> to vector<2x256xf32>
    %29 = arith.mulf %10, %28 : vector<2x256xf32>
    %cst_21 = arith.constant dense<0.000000e+00> : vector<32x256xf32>
    %30 = tpu.matmul %2, %29, %cst_21 {dimension_numbers = #tpu.dot_dimension_numbers<[1], [0], [0], [1], [0, 0, 1, 1], [], []>} : vector<32x2xf32>, vector<2x256xf32>, vector<32x256xf32> -> vector<32x256xf32>
    %31 = vector.broadcast %3 : vector<32x1xf32> to vector<32x256xf32>
    %32 = arith.addf %30, %31 : vector<32x256xf32>
    %33 = arith.negf %32 : vector<32x256xf32>
    %34 = math.exp %33 : vector<32x256xf32>
    %cst_22 = arith.constant 1.000000e+00 : f32
    %35 = vector.broadcast %cst_22 : f32 to vector<32x256xf32>
    %36 = arith.addf %35, %34 : vector<32x256xf32>
    %37 = arith.divf %35, %36 : vector<32x256xf32>
    %c0_23 = arith.constant 0 : index
    %c0_24 = arith.constant 0 : index
    %c0_25 = arith.constant 0 : index
    %38 = vector.load %arg1[%c0_23, %c0_24, %c0_25] : memref<1x32x256xf32, #tpu.memory_space<vmem>>, vector<1x32x256xf32>
    %39 = vector.shape_cast %38 : vector<1x32x256xf32> to vector<32x256xf32>
    %40 = arith.mulf %39, %37 : vector<32x256xf32>
    %c0_26 = arith.constant 0 : index
    %c0_27 = arith.constant 0 : index
    %c0_28 = arith.constant 0 : index
    %41 = vector.load %arg9[%c0_26, %c0_27, %c0_28] : memref<1x32x256xf32, #tpu.memory_space<vmem>>, vector<1x32x256xf32>
    %42 = vector.shape_cast %41 : vector<1x32x256xf32> to vector<32x256xf32>
    %43 = vector.shape_cast %40 : vector<32x256xf32> to vector<1x32x256xf32>
    tpu.vector_store %arg9[%c0_26, %c0_27, %c0_28], %43 {strides = array<i32>} : memref<1x32x256xf32, #tpu.memory_space<vmem>>, vector<1x32x256xf32>,
    return
  }
  func.func @transform_0(%arg0: i32) -> (i32, i32, i32) {
    %c0_i32 = arith.constant 0 : i32
    %c0_i32_0 = arith.constant 0 : i32
    %c0_i32_1 = arith.constant 0 : i32
    return %arg0, %c0_i32, %c0_i32_0 : i32, i32, i32
  }
  func.func @transform_1(%arg0: i32) -> (i32, i32) {
    %c0_i32 = arith.constant 0 : i32
    %c0_i32_0 = arith.constant 0 : i32
    %c0_i32_1 = arith.constant 0 : i32
    return %c0_i32, %c0_i32_0 : i32, i32
  }
  func.func @transform_2(%arg0: i32) -> (i32, i32) {
    %c0_i32 = arith.constant 0 : i32
    %c0_i32_0 = arith.constant 0 : i32
    %c0_i32_1 = arith.constant 0 : i32
    return %c0_i32, %c0_i32_0 : i32, i32
  }
  func.func @transform_3(%arg0: i32) -> (i32, i32) {
    %c0_i32 = arith.constant 0 : i32
    %c0_i32_0 = arith.constant 0 : i32
    %c0_i32_1 = arith.constant 0 : i32
    return %c0_i32, %c0_i32_0 : i32, i32
  }
  func.func @transform_4(%arg0: i32) -> (i32, i32) {
    %c0_i32 = arith.constant 0 : i32
    %c0_i32_0 = arith.constant 0 : i32
    %c0_i32_1 = arith.constant 0 : i32
    return %c0_i32, %c0_i32_0 : i32, i32
  }
  func.func @transform_5(%arg0: i32) -> (i32, i32) {
    %c0_i32 = arith.constant 0 : i32
    %c0_i32_0 = arith.constant 0 : i32
    %c0_i32_1 = arith.constant 0 : i32
    return %c0_i32, %c0_i32_0 : i32, i32
  }
  func.func @transform_6(%arg0: i32) -> (i32, i32) {
    %c0_i32 = arith.constant 0 : i32
    %c0_i32_0 = arith.constant 0 : i32
    %c0_i32_1 = arith.constant 0 : i32
    return %c0_i32, %c0_i32_0 : i32, i32
  }
  func.func @transform_7(%arg0: i32) -> i32 {
    %c0_i32 = arith.constant 0 : i32
    %c0_i32_0 = arith.constant 0 : i32
    return %c0_i32 : i32
  }
  func.func @transform_8(%arg0: i32) -> (i32, i32, i32) {
    %c0_i32 = arith.constant 0 : i32
    %c0_i32_0 = arith.constant 0 : i32
    %c0_i32_1 = arith.constant 0 : i32
    return %arg0, %c0_i32, %c0_i32_0 : i32, i32, i32
  }
}

</mosaic_0001>

<llo_original>
// kernel: ela_forward.1
$region0: #{ela_forward.1}
  #allocation0 [shape = 'u32[]', space=smem, size = 0x4, offset = 0x4, fixed_abs, tag = 'smem constant byte address 0x4 - core index']
  #allocation1 [shape = 'u32[144,128]{1,0:T(1,128)}', space=vmem, size = 0x12000, scoped, tag = 'internal scratch']
  #allocation2 [shape = 'f32[1]{0:T(128)S(6)}', space=smem, size = 0x200, scoped, tag = 'scoped memory for ela_forward.1']
  %s0 = inlined_call_operand.vmem [shape: f32[2,32,256], index: 0, kind: input, shape index: {}]
  %s1 = inlined_call_operand.vmem [shape: f32[2,32], index: 1, kind: input, shape index: {}]
  %s2 = inlined_call_operand.vmem [shape: f32[2,1], index: 2, kind: input, shape index: {}]
  %s3 = inlined_call_operand.vmem [shape: f32[32,2], index: 3, kind: input, shape index: {}]
  %s4 = inlined_call_operand.vmem [shape: f32[32,1], index: 4, kind: input, shape index: {}]
  %s5 = inlined_call_operand.hbm [shape: f32[256,256], index: 5, kind: input, shape index: {}]
  %s6 = inlined_call_operand.hbm [shape: f32[256,256], index: 6, kind: input, shape index: {}]
  %s7 = inlined_call_operand.<no memory space> [shape: f32[1], index: 7, kind: input, shape index: {}]
  %s8 = inlined_call_operand.vmem [shape: f32[2,32,256], index: 8, kind: output, shape index: {}]
  %s9 = sld [smem:[#allocation0]]
  $region73: #{ela_forward.1} parent=0
    _
  %s11 = ssub.s32 1, %s9
  %s12 = scalar_select 0, %s11, %s9
  %13 = sst [smem:[#allocation2]] %s7
  $region1: #{ela_forward.1} parent=0
    #allocation3 [shape = 'u8[262144]{0}', space=vmem, size = 0x40000, scoped, tag = 'input window, operand 5, single buffered']
    #allocation4 [shape = 's32[2]{0}', space=sflag, size = 0x8, scoped, tag = 'scoped memory for ela_forward.1']
    #allocation5 [shape = 'u8[262144]{0}', space=vmem, size = 0x40000, scoped, tag = 'input window, operand 6, single buffered']
    #allocation6 [shape = 's32[1]{0}', space=sflag, size = 0x4, scoped, tag = 'scoped memory for ela_forward.1']
    %14 = vsyncpa [#allocation4], 0
    %15 = vsyncpa [#allocation6], 0
    loop: start=0, step=1, limit=4
    $region2: #{ela_forward.1} parent=1 // loop_pre_header
      _
    $region3: #{ela_forward.1} parent=1 // loop_header
      %s17 = sphi 0, %s21
      %p18 = scmp.ge.s32.totalorder %s17, 4
      %s27 = sphi 0, %s29
      %s30 = sphi 0, %s27
      %s31 = sphi 0, %s30
      %s47 = sphi 0, %s31
      %s51 = sphi 0, %s51
      %s53 = sphi 0, %s51
      %s54 = sphi 0, %s53
      %s68 = sphi 0, %s54
      %s72 = sphi 0, %s72
      %s74 = sphi 0, %s72
      %s75 = sphi 0, %s74
      %s89 = sphi 0, %s75
      %s93 = sphi 0, %s93
      %s95 = sphi 0, %s93
      %s96 = sphi 0, %s95
      %s110 = sphi 0, %s96
      %s114 = sphi 0, %s114
      %s116 = sphi 0, %s114
      %s117 = sphi 0, %s116
      %s131 = sphi 0, %s117
      %s135 = sphi 0, %s135
      %s137 = sphi 0, %s135
      %s138 = sphi 0, %s137
      %s152 = sphi 0, %s138
      %s156 = sphi 0, %s156
      %s158 = sphi 0, %s156
      %s159 = sphi 0, %s158
      %s173 = sphi 0, %s159
      %s177 = sphi 0, %s177
      %s179 = sphi 0, %s177
      %s180 = sphi 0, %s179
      %s194 = sphi 0, %s180
      %s200 = sphi 0, %s202
      %s203 = sphi 0, %s200
      %s204 = sphi 0, %s203
      %s220 = sphi 0, %s204
    $region4: #{ela_forward.1} parent=1 // loop_header_branch
      %20 = sbr.rel (%p18) target = $region8
    $region5: #{ela_forward.1} parent=1 // loop_body
      %s22 = ssub.s32 %s17, 1
      %s23 = ssub.s32 %s17, 2
      %s24 = sadd.s32 %s17, 1
      %s25 = ssub.s32 %s17, %s24
      %p26 = scmp.eq.s32.totalorder %s25, 0
      %s28 = sadd.s32 %s27, 1
      %s29 = scalar_select %p26, %s27, %s28
      %p32 = pneg %p26
      %p33 = scmp.eq.s32.totalorder %s17, 1
      %p34 = por %p32, %p33
      %p35 = scmp.ne.s32.totalorder %s27, %s30
      %p36 = scmp.eq.s32.totalorder %s17, 0
      %p37 = por %p35, %p36
      %p38 = scmp.ne.s32.totalorder %s27, %s30
      %p39 = scmp.eq.s32.totalorder %s22, 1
      %p40 = por %p38, %p39
      %p41 = scmp.ne.s32.totalorder %s30, %s31
      %p42 = scmp.eq.s32.totalorder %s22, 0
      %p43 = por %p41, %p42
      %p44 = scmp.ne.s32.totalorder %s30, %s31
      %p45 = scmp.eq.s32.totalorder %s23, 1
      %p46 = por %p44, %p45
      %p48 = scmp.ne.s32.totalorder %s31, %s47
      %p49 = scmp.eq.s32.totalorder %s23, 0
      %p50 = por %p48, %p49
      %s52 = sadd.s32 %s51, 1
      %p55 = scmp.eq.s32.totalorder %s17, 1
      %p56 = scmp.ne.s32.totalorder %s51, %s53
      %p57 = scmp.eq.s32.totalorder %s17, 0
      %p58 = por %p56, %p57
      %p59 = scmp.ne.s32.totalorder %s51, %s53
      %p60 = scmp.eq.s32.totalorder %s22, 1
      %p61 = por %p59, %p60
      %p62 = scmp.ne.s32.totalorder %s53, %s54
      %p63 = scmp.eq.s32.totalorder %s22, 0
      %p64 = por %p62, %p63
      %p65 = scmp.ne.s32.totalorder %s53, %s54
      %p66 = scmp.eq.s32.totalorder %s23, 1
      %p67 = por %p65, %p66
      %p69 = scmp.ne.s32.totalorder %s54, %s68
      %p70 = scmp.eq.s32.totalorder %s23, 0
      %p71 = por %p69, %p70
      %s73 = sadd.s32 %s72, 1
      %p76 = scmp.eq.s32.totalorder %s17, 1
      %p77 = scmp.ne.s32.totalorder %s72, %s74
      %p78 = scmp.eq.s32.totalorder %s17, 0
      %p79 = por %p77, %p78
      %p80 = scmp.ne.s32.totalorder %s72, %s74
      %p81 = scmp.eq.s32.totalorder %s22, 1
      %p82 = por %p80, %p81
      %p83 = scmp.ne.s32.totalorder %s74, %s75
      %p84 = scmp.eq.s32.totalorder %s22, 0
      %p85 = por %p83, %p84
      %p86 = scmp.ne.s32.totalorder %s74, %s75
      %p87 = scmp.eq.s32.totalorder %s23, 1
      %p88 = por %p86, %p87
      %p90 = scmp.ne.s32.totalorder %s75, %s89
      %p91 = scmp.eq.s32.totalorder %s23, 0
      %p92 = por %p90, %p91
      %s94 = sadd.s32 %s93, 1
      %p97 = scmp.eq.s32.totalorder %s17, 1
      %p98 = scmp.ne.s32.totalorder %s93, %s95
      %p99 = scmp.eq.s32.totalorder %s17, 0
      %p100 = por %p98, %p99
      %p101 = scmp.ne.s32.totalorder %s93, %s95
      %p102 = scmp.eq.s32.totalorder %s22, 1
      %p103 = por %p101, %p102
      %p104 = scmp.ne.s32.totalorder %s95, %s96
      %p105 = scmp.eq.s32.totalorder %s22, 0
      %p106 = por %p104, %p105
      %p107 = scmp.ne.s32.totalorder %s95, %s96
      %p108 = scmp.eq.s32.totalorder %s23, 1
      %p109 = por %p107, %p108
      %p111 = scmp.ne.s32.totalorder %s96, %s110
      %p112 = scmp.eq.s32.totalorder %s23, 0
      %p113 = por %p111, %p112
      %s115 = sadd.s32 %s114, 1
      %p118 = scmp.eq.s32.totalorder %s17, 1
      %p119 = scmp.ne.s32.totalorder %s114, %s116
      %p120 = scmp.eq.s32.totalorder %s17, 0
      %p121 = por %p119, %p120
      %p122 = scmp.ne.s32.totalorder %s114, %s116
      %p123 = scmp.eq.s32.totalorder %s22, 1
      %p124 = por %p122, %p123
      %p125 = scmp.ne.s32.totalorder %s116, %s117
      %p126 = scmp.eq.s32.totalorder %s22, 0
      %p127 = por %p125, %p126
      %p128 = scmp.ne.s32.totalorder %s116, %s117
      %p129 = scmp.eq.s32.totalorder %s23, 1
      %p130 = por %p128, %p129
      %p132 = scmp.ne.s32.totalorder %s117, %s131
      %p133 = scmp.eq.s32.totalorder %s23, 0
      %p134 = por %p132, %p133
      %s136 = sadd.s32 %s135, 1
      %p139 = scmp.eq.s32.totalorder %s17, 1
      %p140 = scmp.ne.s32.totalorder %s135, %s137
      %p141 = scmp.eq.s32.totalorder %s17, 0
      %p142 = por %p140, %p141
      %p143 = scmp.ne.s32.totalorder %s135, %s137
      %p144 = scmp.eq.s32.totalorder %s22, 1
      %p145 = por %p143, %p144
      %p146 = scmp.ne.s32.totalorder %s137, %s138
      %p147 = scmp.eq.s32.totalorder %s22, 0
      %p148 = por %p146, %p147
      %p149 = scmp.ne.s32.totalorder %s137, %s138
      %p150 = scmp.eq.s32.totalorder %s23, 1
      %p151 = por %p149, %p150
      %p153 = scmp.ne.s32.totalorder %s138, %s152
      %p154 = scmp.eq.s32.totalorder %s23, 0
      %p155 = por %p153, %p154
      %s157 = sadd.s32 %s156, 1
      %p160 = scmp.eq.s32.totalorder %s17, 1
      %p161 = scmp.ne.s32.totalorder %s156, %s158
      %p162 = scmp.eq.s32.totalorder %s17, 0
      %p163 = por %p161, %p162
      %p164 = scmp.ne.s32.totalorder %s156, %s158
      %p165 = scmp.eq.s32.totalorder %s22, 1
      %p166 = por %p164, %p165
      %p167 = scmp.ne.s32.totalorder %s158, %s159
      %p168 = scmp.eq.s32.totalorder %s22, 0
      %p169 = por %p167, %p168
      %p170 = scmp.ne.s32.totalorder %s158, %s159
      %p171 = scmp.eq.s32.totalorder %s23, 1
      %p172 = por %p170, %p171
      %p174 = scmp.ne.s32.totalorder %s159, %s173
      %p175 = scmp.eq.s32.totalorder %s23, 0
      %p176 = por %p174, %p175
      %s178 = sadd.s32 %s177, 1
      %p181 = scmp.eq.s32.totalorder %s17, 1
      %p182 = scmp.ne.s32.totalorder %s177, %s179
      %p183 = scmp.eq.s32.totalorder %s17, 0
      %p184 = por %p182, %p183
      %p185 = scmp.ne.s32.totalorder %s177, %s179
      %p186 = scmp.eq.s32.totalorder %s22, 1
      %p187 = por %p185, %p186
      %p188 = scmp.ne.s32.totalorder %s179, %s180
      %p189 = scmp.eq.s32.totalorder %s22, 0
      %p190 = por %p188, %p189
      %p191 = scmp.ne.s32.totalorder %s179, %s180
      %p192 = scmp.eq.s32.totalorder %s23, 1
      %p193 = por %p191, %p192
      %p195 = scmp.ne.s32.totalorder %s180, %s194
      %p196 = scmp.eq.s32.totalorder %s23, 0
      %p197 = por %p195, %p196
      %s198 = ssub.s32 %s17, %s24
      %p199 = scmp.eq.s32.totalorder %s198, 0
      %s201 = sadd.s32 %s200, 1
      %s202 = scalar_select %p199, %s200, %s201
      %p205 = pneg %p199
      %p206 = scmp.eq.s32.totalorder %s17, 1
      %p207 = por %p205, %p206
      %p208 = scmp.ne.s32.totalorder %s200, %s203
      %p209 = scmp.eq.s32.totalorder %s17, 0
      %p210 = por %p208, %p209
      %p211 = scmp.ne.s32.totalorder %s200, %s203
      %p212 = scmp.eq.s32.totalorder %s22, 1
      %p213 = por %p211, %p212
      %p214 = scmp.ne.s32.totalorder %s203, %s204
      %p215 = scmp.eq.s32.totalorder %s22, 0
      %p216 = por %p214, %p215
      %p217 = scmp.ne.s32.totalorder %s203, %s204
      %p218 = scmp.eq.s32.totalorder %s23, 1
      %p219 = por %p217, %p218
      %p221 = scmp.ne.s32.totalorder %s204, %s220
      %p222 = scmp.eq.s32.totalorder %s23, 0
      %p223 = por %p221, %p222
      %p224 = scmp.le.s32.totalorder 1, %s17
      %p225 = scmp.lt.s32.totalorder %s17, 3
      %p226 = pnand %p224, %p225
      %p227 = pneg %p226
      // Predicated region
      $region9: #{ela_forward.1} parent=5 // pred_check
        _
      $region10: #{ela_forward.1} parent=5 // pred_check_branch
        %229 = sbr.rel (%p226) target = $region12
      $region11: #{ela_forward.1} parent=5 // pred_region
        %s230 = ssub.s32 %s17, 1
        // Predicated region
        $region13: #{ela_forward.1} parent=11 // pred_check
          %p231 = pneg %p64
        $region14: #{ela_forward.1} parent=11 // pred_check_branch
          %233 = sbr.rel (%p231) target = $region16
        $region15: #{ela_forward.1} parent=11 // pred_region
          _
        $region16: #{ela_forward.1} parent=11 // pred_fallthru
          _
        // Predicated region
        $region17: #{ela_forward.1} parent=11 // pred_check
          %p234 = pneg %p85
        $region18: #{ela_forward.1} parent=11 // pred_check_branch
          %236 = sbr.rel (%p234) target = $region20
        $region19: #{ela_forward.1} parent=11 // pred_region
          _
        $region20: #{ela_forward.1} parent=11 // pred_fallthru
          _
        // Predicated region
        $region21: #{ela_forward.1} parent=11 // pred_check
          %p237 = pneg %p106
        $region22: #{ela_forward.1} parent=11 // pred_check_branch
          %239 = sbr.rel (%p237) target = $region24
        $region23: #{ela_forward.1} parent=11 // pred_region
          _
        $region24: #{ela_forward.1} parent=11 // pred_fallthru
          _
        // Predicated region
        $region25: #{ela_forward.1} parent=11 // pred_check
          %p240 = pneg %p127
        $region26: #{ela_forward.1} parent=11 // pred_check_branch
          %242 = sbr.rel (%p240) target = $region28
        $region27: #{ela_forward.1} parent=11 // pred_region
          _
        $region28: #{ela_forward.1} parent=11 // pred_fallthru
          _
        // Predicated region
        $region29: #{ela_forward.1} parent=11 // pred_check
          %p243 = pneg %p148
        $region30: #{ela_forward.1} parent=11 // pred_check_branch
          %245 = sbr.rel (%p243) target = $region32
        $region31: #{ela_forward.1} parent=11 // pred_region
          %s247 = ssub.s32 8192, 8192
          %248 = vsyncadd [#allocation4], %s247
          %s249 = sshll.u32 [#allocation3], 4
          %s250 = int_to_ptr.vmem [resolvable:$true] %s249
          %255 = dma.hbm_to_vmem [thread:$0]  %s5, 8192, %s250, [#allocation4], 256, 256, 16
        $region32: #{ela_forward.1} parent=11 // pred_fallthru
          _
        // Predicated region
        $region33: #{ela_forward.1} parent=11 // pred_check
          %p256 = pneg %p169
        $region34: #{ela_forward.1} parent=11 // pred_check_branch
          %258 = sbr.rel (%p256) target = $region36
        $region35: #{ela_forward.1} parent=11 // pred_region
          %s260 = ssub.s32 8192, 8192
          %261 = vsyncadd [#allocation6], %s260
          %s262 = sshll.u32 [#allocation5], 4
          %s263 = int_to_ptr.vmem [resolvable:$true] %s262
          %268 = dma.hbm_to_vmem [thread:$0]  %s6, 8192, %s263, [#allocation6], 256, 256, 16
        $region36: #{ela_forward.1} parent=11 // pred_fallthru
          _
        // Predicated region
        $region37: #{ela_forward.1} parent=11 // pred_check
          %p269 = pneg %p190
        $region38: #{ela_forward.1} parent=11 // pred_check_branch
          %271 = sbr.rel (%p269) target = $region40
        $region39: #{ela_forward.1} parent=11 // pred_region
          _
        $region40: #{ela_forward.1} parent=11 // pred_fallthru
          _
      $region12: #{ela_forward.1} parent=5 // pred_fallthru
        _
      %p272 = scmp.lt.s32.totalorder %s17, 2
      // Predicated region
      $region41: #{ela_forward.1} parent=5 // pred_check
        %p273 = pneg %p272
      $region42: #{ela_forward.1} parent=5 // pred_check_branch
        %275 = sbr.rel (%p273) target = $region44
      $region43: #{ela_forward.1} parent=5 // pred_region
        // Predicated region
        $region45: #{ela_forward.1} parent=43 // pred_check
          %p276 = pneg %p37
        $region46: #{ela_forward.1} parent=43 // pred_check_branch
          %278 = sbr.rel (%p276) target = $region48
        $region47: #{ela_forward.1} parent=43 // pred_region
          %p279 = scmp.lt.s32.totalorder %s17, 1
          %s280 = scalar_select %p279, %s17, 1
          %s281 = smul.addr %s280, 8
          %s282 = smul.addr %s281, 8
          %s283 = scalar_lea.vmem %s0, %s282
        $region48: #{ela_forward.1} parent=43 // pred_fallthru
          _
      $region44: #{ela_forward.1} parent=5 // pred_fallthru
        _
      %p284 = scmp.le.s32.totalorder 1, %s17
      %p285 = scmp.lt.s32.totalorder %s17, 3
      %p286 = pnand %p284, %p285
      %p287 = pneg %p286
      // Predicated region
      $region49: #{ela_forward.1} parent=5 // pred_check
        _
      $region50: #{ela_forward.1} parent=5 // pred_check_branch
        %289 = sbr.rel (%p286) target = $region52
      $region51: #{ela_forward.1} parent=5 // pred_region
        %s290 = ssub.s32 %s17, 1
        // Predicated region
        $region53: #{ela_forward.1} parent=51 // pred_check
          %p291 = pneg %p148
        $region54: #{ela_forward.1} parent=51 // pred_check_branch
          %293 = sbr.rel (%p291) target = $region56
        $region55: #{ela_forward.1} parent=51 // pred_region
          %294 = dma.done [#allocation4], 8192
        $region56: #{ela_forward.1} parent=51 // pred_fallthru
          _
        // Predicated region
        $region57: #{ela_forward.1} parent=51 // pred_check
          %p295 = pneg %p169
        $region58: #{ela_forward.1} parent=51 // pred_check_branch
          %297 = sbr.rel (%p295) target = $region60
        $region59: #{ela_forward.1} parent=51 // pred_region
          %298 = dma.done [#allocation6], 8192
        $region60: #{ela_forward.1} parent=51 // pred_fallthru
          _
        %p299 = scmp.lt.s32.totalorder %s22, 1
        %s300 = scalar_select %p299, %s22, 1
        %s301 = smul.addr %s300, 8
        %s302 = smul.addr %s301, 8
        %s303 = scalar_lea.vmem %s0, %s302
        %p304 = pneg %p43
        %p305 = pneg %p40
        %p306 = pneg %p64
        %p307 = pneg %p61
        %p308 = pneg %p85
        %p309 = pneg %p82
        %p310 = pneg %p106
        %p311 = pneg %p103
        %p312 = pneg %p127
        %p313 = pneg %p124
        %p314 = pneg %p148
        %p315 = pneg %p145
        %p316 = pneg %p169
        %p317 = pneg %p166
        %p318 = pneg %p190
        %p319 = pneg %p187
        %p320 = pneg %p216
        %p321 = pneg %p213
        %p322 = scmp.lt.s32.totalorder %s22, 1
        %s323 = scalar_select %p322, %s22, 1
        %s324 = smul.addr %s323, 8
        %s325 = smul.addr %s324, 8
        %s326 = scalar_lea.vmem %s8, %s325
        %p327 = scmp.lt.s32.totalorder %s22, 1
        %s328 = scalar_select %p327, %s22, 1
        %s329 = smul.addr %s328, 8
        %s330 = smul.addr %s329, 8
        %s331 = scalar_lea.vmem %s0, %s330
        %p332 = scmp.lt.s32.totalorder %s22, 1
        %s333 = scalar_select %p332, %s22, 1
        %s334 = smul.addr %s333, 8
        %s335 = smul.addr %s334, 8
        %s336 = scalar_lea.vmem %s8, %s335
        %v337 = vld [vmem:[%s1] sm:$0x3]
        %v338 = vld [vmem:[%s2] sm:$0x3]
        %v339 = vld [vmem:[%s3] sm:$0xff]
        %v340 = vld [vmem:[%s3 + $0x8] sm:$0xff]
        %v341 = vld [vmem:[%s3 + $0x10] sm:$0xff]
        %v342 = vld [vmem:[%s3 + $0x18] sm:$0xff]
        %v343 = vld [vmem:[%s4] sm:$0xff]
        %v344 = vld [vmem:[%s4 + $0x8] sm:$0xff]
        %v345 = vld [vmem:[%s4 + $0x10] sm:$0xff]
        %v346 = vld [vmem:[%s4 + $0x18] sm:$0xff]
        %v347 = vld [vmem:[%s331] sm:$0xff]
        %v348 = vld [vmem:[%s331 + $0x8] sm:$0xff]
        %v349 = vld [vmem:[%s331 + $0x10] sm:$0xff]
        %v350 = vld [vmem:[%s331 + $0x18] sm:$0xff]
        %v351 = vld [vmem:[%s331 + $0x20] sm:$0xff]
        %v352 = vld [vmem:[%s331 + $0x28] sm:$0xff]
        %v353 = vld [vmem:[%s331 + $0x30] sm:$0xff]
        %v354 = vld [vmem:[%s331 + $0x38] sm:$0xff]
        %356 = vset.pattern.permute.xlu0 0
        %357 = vperm.xlu0 %356, %v338
        %v358 = vpop.permute.xlu0 %357
        %vm360 = vcmask 261120
        %v362 = vsel %vm360, %v337, 0
        %364 = vmatprep.subr.mxu0 %v348
        %365 = vmatpush1.msra.mxu0 %v347
        %366 = vmatprep.subr.mxu0 %v350
        %367 = vmatpush1.msra.mxu0 %v349
        %368 = vmatprep.subr.mxu0 %v352
        %369 = vmatpush1.msra.mxu0 %v351
        %370 = vmatprep.subr.mxu0 %v354
        %371 = vmatpush1.msra.mxu0 %v353
        %372 = vmatprep.subr.mxu0 0.0
        %373 = vmatpush1.msra.mxu0 0.0
        %374 = vmatprep.subr.mxu0 0.0
        %375 = vmatpush1.msra.mxu0 0.0
        %376 = vmatprep.subr.mxu0 0.0
        %377 = vmatpush1.msra.mxu0 0.0
        %378 = vmatprep.subr.mxu0 0.0
        %379 = vmatpush1.msra.mxu0 0.0
        %380 = vmatprep.subr.mxu0 0.0
        %381 = vmatpush1.msra.mxu0 0.0
        %382 = vmatprep.subr.mxu0 0.0
        %383 = vmatpush1.msra.mxu0 0.0
        %384 = vmatprep.subr.mxu0 0.0
        %385 = vmatpush1.msra.mxu0 0.0
        %386 = vmatprep.subr.mxu0 0.0
        %387 = vmatpush1.msra.mxu0 0.0
        %388 = vmatprep.subr.mxu0 0.0
        %389 = vmatpush1.msra.mxu0 0.0
        %390 = vmatprep.subr.mxu0 0.0
        %391 = vmatpush1.msra.mxu0 0.0
        %392 = vmatprep.subr.mxu0 0.0
        %393 = vmatpush1.msra.mxu0 0.0
        %394 = vmatprep.subr.mxu0 0.0
        %395 = vmatpush1.msra.mxu0 0.0
        %396 = vmatprep.subr.mxu0 0.0
        %397 = vmatpush1.msra.mxu0 0.0
        %398 = vmatprep.subr.mxu0 0.0
        %399 = vmatpush1.msra.mxu0 0.0
        %400 = vmatprep.subr.mxu0 0.0
        %401 = vmatpush1.msra.mxu0 0.0
        %402 = vmatprep.subr.mxu0 0.0
        %403 = vmatpush1.msra.mxu0 0.0
        %404 = vmatprep.subr.mxu0 0.0
        %405 = vmatpush1.msra.mxu0 0.0
        %406 = vmatprep.subr.mxu0 0.0
        %407 = vmatpush1.msra.mxu0 0.0
        %408 = vmatprep.subr.mxu0 0.0
        %409 = vmatpush1.msra.mxu0 0.0
        %410 = vmatprep.subr.mxu0 0.0
        %411 = vmatpush1.msra.mxu0 0.0
        %412 = vmatprep.subr.mxu0 0.0
        %413 = vmatpush1.msra.mxu0 0.0
        %414 = vmatprep.subr.mxu0 0.0
        %415 = vmatpush1.msra.mxu0 0.0
        %416 = vmatprep.subr.mxu0 0.0
        %417 = vmatpush1.msra.mxu0 0.0
        %418 = vmatprep.subr.mxu0 0.0
        %419 = vmatpush1.msra.mxu0 0.0
        %420 = vmatprep.subr.mxu0 0.0
        %421 = vmatpush1.msra.mxu0 0.0
        %422 = vmatprep.subr.mxu0 0.0
        %423 = vmatpush1.msra.mxu0 0.0
        %424 = vmatprep.subr.mxu0 0.0
        %425 = vmatpush1.msra.mxu0 0.0
        %426 = vmatprep.subr.mxu0 0.0
        %427 = vmatpush1.msra.mxu0 0.0
        %428 = vmatprep.mubr.f32.mxu0 0.0
        %429 = vmatmul.mubr.f32.gmra.mrb[0].mxu0 %v362
        %v430 = vpop.f32.mrb[0].mxu0
        %v431 = vadd.f32 %v358, %v430
        %v432 = vpop.f32.mrb[0].mxu0
        %v433 = vadd.f32 %v358, %v432
        %434 = vdwg.mxu0
        %v435 = vmax.f32 %v431, 0.0
        %v436 = vmax.f32 %v433, 0.0
        %vm437 = vcmask 1041408
        %v438 = vsel %vm437, %v435, 0.0
        %v439 = vrot.slane %v438, 4
        %v440 = vadd.f32 %v438, %v439
        %v441 = vrot.slane %v440, 2
        %v442 = vadd.f32 %v440, %v441
        %v443 = vrot.slane %v442, 1
        %v444 = vadd.f32 %v442, %v443
        %v445 = vsel %vm437, %v436, 0.0
        %v446 = vrot.slane %v445, 4
        %v447 = vadd.f32 %v445, %v446
        %v448 = vrot.slane %v447, 2
        %v449 = vadd.f32 %v447, %v448
        %v450 = vrot.slane %v449, 1
        %v451 = vadd.f32 %v449, %v450
        %v452 = vsel %vm437, %v435, -inf
        %v453 = vrot.slane %v452, 4
        %v454 = vmax.f32 %v452, %v453
        %v455 = vrot.slane %v454, 2
        %v456 = vmax.f32 %v454, %v455
        %v457 = vrot.slane %v456, 1
        %v458 = vmax.f32 %v456, %v457
        %v459 = vsel %vm437, %v436, -inf
        %v460 = vrot.slane %v459, 4
        %v461 = vmax.f32 %v459, %v460
        %v462 = vrot.slane %v461, 2
        %v463 = vmax.f32 %v461, %v462
        %v464 = vrot.slane %v463, 1
        %v465 = vmax.f32 %v463, %v464
        %v466 = vld [vmem:[#allocation3] sm:$0xff]
        %v467 = vld [vmem:[#allocation3 + $0x8] sm:$0xff]
        %v468 = vld [vmem:[#allocation3 + $0x10] sm:$0xff]
        %v469 = vld [vmem:[#allocation3 + $0x18] sm:$0xff]
        %v470 = vld [vmem:[#allocation3 + $0x20] sm:$0xff]
        %v471 = vld [vmem:[#allocation3 + $0x28] sm:$0xff]
        %v472 = vld [vmem:[#allocation3 + $0x30] sm:$0xff]
        %v473 = vld [vmem:[#allocation3 + $0x38] sm:$0xff]
        %v474 = vld [vmem:[#allocation3 + $0x40] sm:$0xff]
        %v475 = vld [vmem:[#allocation3 + $0x48] sm:$0xff]
        %v476 = vld [vmem:[#allocation3 + $0x50] sm:$0xff]
        %v477 = vld [vmem:[#allocation3 + $0x58] sm:$0xff]
        %v478 = vld [vmem:[#allocation3 + $0x60] sm:$0xff]
        %v479 = vld [vmem:[#allocation3 + $0x68] sm:$0xff]
        %v480 = vld [vmem:[#allocation3 + $0x70] sm:$0xff]
        %v481 = vld [vmem:[#allocation3 + $0x78] sm:$0xff]
        %v482 = vld [vmem:[#allocation3 + $0x80] sm:$0xff]
        %v483 = vld [vmem:[#allocation3 + $0x88] sm:$0xff]
        %v484 = vld [vmem:[#allocation3 + $0x90] sm:$0xff]
        %v485 = vld [vmem:[#allocation3 + $0x98] sm:$0xff]
        %v486 = vld [vmem:[#allocation3 + $0xa0] sm:$0xff]
        %v487 = vld [vmem:[#allocation3 + $0xa8] sm:$0xff]
        %v488 = vld [vmem:[#allocation3 + $0xb0] sm:$0xff]
        %v489 = vld [vmem:[#allocation3 + $0xb8] sm:$0xff]
        %v490 = vld [vmem:[#allocation3 + $0xc0] sm:$0xff]
        %v491 = vld [vmem:[#allocation3 + $0xc8] sm:$0xff]
        %v492 = vld [vmem:[#allocation3 + $0xd0] sm:$0xff]
        %v493 = vld [vmem:[#allocation3 + $0xd8] sm:$0xff]
        %v494 = vld [vmem:[#allocation3 + $0xe0] sm:$0xff]
        %v495 = vld [vmem:[#allocation3 + $0xe8] sm:$0xff]
        %v496 = vld [vmem:[#allocation3 + $0xf0] sm:$0xff]
        %v497 = vld [vmem:[#allocation3 + $0xf8] sm:$0xff]
        %v498 = vld [vmem:[#allocation3 + $0x100] sm:$0xff]
        %v499 = vld [vmem:[#allocation3 + $0x108] sm:$0xff]
        %v500 = vld [vmem:[#allocation3 + $0x110] sm:$0xff]
        %v501 = vld [vmem:[#allocation3 + $0x118] sm:$0xff]
        %v502 = vld [vmem:[#allocation3 + $0x120] sm:$0xff]
        %v503 = vld [vmem:[#allocation3 + $0x128] sm:$0xff]
        %v504 = vld [vmem:[#allocation3 + $0x130] sm:$0xff]
        %v505 = vld [vmem:[#allocation3 + $0x138] sm:$0xff]
        %v506 = vld [vmem:[#allocation3 + $0x140] sm:$0xff]
        %v507 = vld [vmem:[#allocation3 + $0x148] sm:$0xff]
        %v508 = vld [vmem:[#allocation3 + $0x150] sm:$0xff]
        %v509 = vld [vmem:[#allocation3 + $0x158] sm:$0xff]
        %v510 = vld [vmem:[#allocation3 + $0x160] sm:$0xff]
        %v511 = vld [vmem:[#allocation3 + $0x168] sm:$0xff]
        %v512 = vld [vmem:[#allocation3 + $0x170] sm:$0xff]
        %v513 = vld [vmem:[#allocation3 + $0x178] sm:$0xff]
        %v514 = vld [vmem:[#allocation3 + $0x180] sm:$0xff]
        %v515 = vld [vmem:[#allocation3 + $0x188] sm:$0xff]
        %v516 = vld [vmem:[#allocation3 + $0x190] sm:$0xff]
        %v517 = vld [vmem:[#allocation3 + $0x198] sm:$0xff]
        %v518 = vld [vmem:[#allocation3 + $0x1a0] sm:$0xff]
        %v519 = vld [vmem:[#allocation3 + $0x1a8] sm:$0xff]
        %v520 = vld [vmem:[#allocation3 + $0x1b0] sm:$0xff]
        %v521 = vld [vmem:[#allocation3 + $0x1b8] sm:$0xff]
        %v522 = vld [vmem:[#allocation3 + $0x1c0] sm:$0xff]
        %v523 = vld [vmem:[#allocation3 + $0x1c8] sm:$0xff]
        %v524 = vld [vmem:[#allocation3 + $0x1d0] sm:$0xff]
        %v525 = vld [vmem:[#allocation3 + $0x1d8] sm:$0xff]
        %v526 = vld [vmem:[#allocation3 + $0x1e0] sm:$0xff]
        %v527 = vld [vmem:[#allocation3 + $0x1e8] sm:$0xff]
        %v528 = vld [vmem:[#allocation3 + $0x1f0] sm:$0xff]
        %v529 = vld [vmem:[#allocation3 + $0x1f8] sm:$0xff]
        %v530 = vld [vmem:[#allocation5] sm:$0xff]
        %v531 = vld [vmem:[#allocation5 + $0x8] sm:$0xff]
        %v532 = vld [vmem:[#allocation5 + $0x10] sm:$0xff]
        %v533 = vld [vmem:[#allocation5 + $0x18] sm:$0xff]
        %v534 = vld [vmem:[#allocation5 + $0x20] sm:$0xff]
        %v535 = vld [vmem:[#allocation5 + $0x28] sm:$0xff]
        %v536 = vld [vmem:[#allocation5 + $0x30] sm:$0xff]
        %v537 = vld [vmem:[#allocation5 + $0x38] sm:$0xff]
        %v538 = vld [vmem:[#allocation5 + $0x40] sm:$0xff]
        %v539 = vld [vmem:[#allocation5 + $0x48] sm:$0xff]
        %v540 = vld [vmem:[#allocation5 + $0x50] sm:$0xff]
        %v541 = vld [vmem:[#allocation5 + $0x58] sm:$0xff]
        %v542 = vld [vmem:[#allocation5 + $0x60] sm:$0xff]
        %v543 = vld [vmem:[#allocation5 + $0x68] sm:$0xff]
        %v544 = vld [vmem:[#allocation5 + $0x70] sm:$0xff]
        %v545 = vld [vmem:[#allocation5 + $0x78] sm:$0xff]
        %v546 = vld [vmem:[#allocation5 + $0x80] sm:$0xff]
        %v547 = vld [vmem:[#allocation5 + $0x88] sm:$0xff]
        %v548 = vld [vmem:[#allocation5 + $0x90] sm:$0xff]
        %v549 = vld [vmem:[#allocation5 + $0x98] sm:$0xff]
        %v550 = vld [vmem:[#allocation5 + $0xa0] sm:$0xff]
        %v551 = vld [vmem:[#allocation5 + $0xa8] sm:$0xff]
        %v552 = vld [vmem:[#allocation5 + $0xb0] sm:$0xff]
        %v553 = vld [vmem:[#allocation5 + $0xb8] sm:$0xff]
        %v554 = vld [vmem:[#allocation5 + $0xc0] sm:$0xff]
        %v555 = vld [vmem:[#allocation5 + $0xc8] sm:$0xff]
        %v556 = vld [vmem:[#allocation5 + $0xd0] sm:$0xff]
        %v557 = vld [vmem:[#allocation5 + $0xd8] sm:$0xff]
        %v558 = vld [vmem:[#allocation5 + $0xe0] sm:$0xff]
        %v559 = vld [vmem:[#allocation5 + $0xe8] sm:$0xff]
        %v560 = vld [vmem:[#allocation5 + $0xf0] sm:$0xff]
        %v561 = vld [vmem:[#allocation5 + $0xf8] sm:$0xff]
        %v562 = vld [vmem:[#allocation5 + $0x100] sm:$0xff]
        %v563 = vld [vmem:[#allocation5 + $0x108] sm:$0xff]
        %v564 = vld [vmem:[#allocation5 + $0x110] sm:$0xff]
        %v565 = vld [vmem:[#allocation5 + $0x118] sm:$0xff]
        %v566 = vld [vmem:[#allocation5 + $0x120] sm:$0xff]
        %v567 = vld [vmem:[#allocation5 + $0x128] sm:$0xff]
        %v568 = vld [vmem:[#allocation5 + $0x130] sm:$0xff]
        %v569 = vld [vmem:[#allocation5 + $0x138] sm:$0xff]
        %v570 = vld [vmem:[#allocation5 + $0x140] sm:$0xff]
        %v571 = vld [vmem:[#allocation5 + $0x148] sm:$0xff]
        %v572 = vld [vmem:[#allocation5 + $0x150] sm:$0xff]
        %v573 = vld [vmem:[#allocation5 + $0x158] sm:$0xff]
        %v574 = vld [vmem:[#allocation5 + $0x160] sm:$0xff]
        %v575 = vld [vmem:[#allocation5 + $0x168] sm:$0xff]
        %v576 = vld [vmem:[#allocation5 + $0x170] sm:$0xff]
        %v577 = vld [vmem:[#allocation5 + $0x178] sm:$0xff]
        %v578 = vld [vmem:[#allocation5 + $0x180] sm:$0xff]
        %v579 = vld [vmem:[#allocation5 + $0x188] sm:$0xff]
        %v580 = vld [vmem:[#allocation5 + $0x190] sm:$0xff]
        %v581 = vld [vmem:[#allocation5 + $0x198] sm:$0xff]
        %v582 = vld [vmem:[#allocation5 + $0x1a0] sm:$0xff]
        %v583 = vld [vmem:[#allocation5 + $0x1a8] sm:$0xff]
        %v584 = vld [vmem:[#allocation5 + $0x1b0] sm:$0xff]
        %v585 = vld [vmem:[#allocation5 + $0x1b8] sm:$0xff]
        %v586 = vld [vmem:[#allocation5 + $0x1c0] sm:$0xff]
        %v587 = vld [vmem:[#allocation5 + $0x1c8] sm:$0xff]
        %v588 = vld [vmem:[#allocation5 + $0x1d0] sm:$0xff]
        %v589 = vld [vmem:[#allocation5 + $0x1d8] sm:$0xff]
        %v590 = vld [vmem:[#allocation5 + $0x1e0] sm:$0xff]
        %v591 = vld [vmem:[#allocation5 + $0x1e8] sm:$0xff]
        %v592 = vld [vmem:[#allocation5 + $0x1f0] sm:$0xff]
        %v593 = vld [vmem:[#allocation5 + $0x1f8] sm:$0xff]
        %594 = vmatprep.subr.mxu0 %v531
        %595 = vmatpush1.msra.mxu0 %v530
        %596 = vmatprep.subr.mxu0 %v533
        %597 = vmatpush1.msra.mxu0 %v532
        %598 = vmatprep.subr.mxu0 %v535
        %599 = vmatpush1.msra.mxu0 %v534
        %600 = vmatprep.subr.mxu0 %v537
        %601 = vmatpush1.msra.mxu0 %v536
        %602 = vmatprep.subr.mxu0 %v539
        %603 = vmatpush1.msra.mxu0 %v538
        %604 = vmatprep.subr.mxu0 %v541
        %605 = vmatpush1.msra.mxu0 %v540
        %606 = vmatprep.subr.mxu0 %v543
        %607 = vmatpush1.msra.mxu0 %v542
        %608 = vmatprep.subr.mxu0 %v545
        %609 = vmatpush1.msra.mxu0 %v544
        %610 = vmatprep.subr.mxu0 %v547
        %611 = vmatpush1.msra.mxu0 %v546
        %612 = vmatprep.subr.mxu0 %v549
        %613 = vmatpush1.msra.mxu0 %v548
        %614 = vmatprep.subr.mxu0 %v551
        %615 = vmatpush1.msra.mxu0 %v550
        %616 = vmatprep.subr.mxu0 %v553
        %617 = vmatpush1.msra.mxu0 %v552
        %618 = vmatprep.subr.mxu0 %v555
        %619 = vmatpush1.msra.mxu0 %v554
        %620 = vmatprep.subr.mxu0 %v557
        %621 = vmatpush1.msra.mxu0 %v556
        %622 = vmatprep.subr.mxu0 %v559
        %623 = vmatpush1.msra.mxu0 %v558
        %624 = vmatprep.subr.mxu0 %v561
        %625 = vmatpush1.msra.mxu0 %v560
        %626 = vmatprep.subr.mxu0 %v563
        %627 = vmatpush1.msra.mxu0 %v562
        %628 = vmatprep.subr.mxu0 %v565
        %629 = vmatpush1.msra.mxu0 %v564
        %630 = vmatprep.subr.mxu0 %v567
        %631 = vmatpush1.msra.mxu0 %v566
        %632 = vmatprep.subr.mxu0 %v569
        %633 = vmatpush1.msra.mxu0 %v568
        %634 = vmatprep.subr.mxu0 %v571
        %635 = vmatpush1.msra.mxu0 %v570
        %636 = vmatprep.subr.mxu0 %v573
        %637 = vmatpush1.msra.mxu0 %v572
        %638 = vmatprep.subr.mxu0 %v575
        %639 = vmatpush1.msra.mxu0 %v574
        %640 = vmatprep.subr.mxu0 %v577
        %641 = vmatpush1.msra.mxu0 %v576
        %642 = vmatprep.subr.mxu0 %v579
        %643 = vmatpush1.msra.mxu0 %v578
        %644 = vmatprep.subr.mxu0 %v581
        %645 = vmatpush1.msra.mxu0 %v580
        %646 = vmatprep.subr.mxu0 %v583
        %647 = vmatpush1.msra.mxu0 %v582
        %648 = vmatprep.subr.mxu0 %v585
        %649 = vmatpush1.msra.mxu0 %v584
        %650 = vmatprep.subr.mxu0 %v587
        %651 = vmatpush1.msra.mxu0 %v586
        %652 = vmatprep.subr.mxu0 %v589
        %653 = vmatpush1.msra.mxu0 %v588
        %654 = vmatprep.subr.mxu0 %v591
        %655 = vmatpush1.msra.mxu0 %v590
        %656 = vmatprep.subr.mxu0 %v593
        %657 = vmatpush1.msra.mxu0 %v592
        %658 = vmatprep.mubr.f32.mxu0 %v465
        %659 = vmatmul.mubr.f32.gmra.mrb[0].mxu0 %v458
        %v660 = vpop.f32.mrb[0].mxu0
        %v661 = vadd.f32 0.0, %v660
        %v662 = vpop.f32.mrb[0].mxu0
        %v663 = vadd.f32 0.0, %v662
        %664 = vdwg.mxu0
        %665 = vmatprep.subr.mxu0 %v467
        %666 = vmatpush1.msra.mxu0 %v466
        %667 = vmatprep.subr.mxu0 %v469
        %668 = vmatpush1.msra.mxu0 %v468
        %669 = vmatprep.subr.mxu0 %v471
        %670 = vmatpush1.msra.mxu0 %v470
        %671 = vmatprep.subr.mxu0 %v473
        %672 = vmatpush1.msra.mxu0 %v472
        %673 = vmatprep.subr.mxu0 %v475
        %674 = vmatpush1.msra.mxu0 %v474
        %675 = vmatprep.subr.mxu0 %v477
        %676 = vmatpush1.msra.mxu0 %v476
        %677 = vmatprep.subr.mxu0 %v479
        %678 = vmatpush1.msra.mxu0 %v478
        %679 = vmatprep.subr.mxu0 %v481
        %680 = vmatpush1.msra.mxu0 %v480
        %681 = vmatprep.subr.mxu0 %v483
        %682 = vmatpush1.msra.mxu0 %v482
        %683 = vmatprep.subr.mxu0 %v485
        %684 = vmatpush1.msra.mxu0 %v484
        %685 = vmatprep.subr.mxu0 %v487
        %686 = vmatpush1.msra.mxu0 %v486
        %687 = vmatprep.subr.mxu0 %v489
        %688 = vmatpush1.msra.mxu0 %v488
        %689 = vmatprep.subr.mxu0 %v491
        %690 = vmatpush1.msra.mxu0 %v490
        %691 = vmatprep.subr.mxu0 %v493
        %692 = vmatpush1.msra.mxu0 %v492
        %693 = vmatprep.subr.mxu0 %v495
        %694 = vmatpush1.msra.mxu0 %v494
        %695 = vmatprep.subr.mxu0 %v497
        %696 = vmatpush1.msra.mxu0 %v496
        %697 = vmatprep.subr.mxu0 %v499
        %698 = vmatpush1.msra.mxu0 %v498
        %699 = vmatprep.subr.mxu0 %v501
        %700 = vmatpush1.msra.mxu0 %v500
        %701 = vmatprep.subr.mxu0 %v503
        %702 = vmatpush1.msra.mxu0 %v502
        %703 = vmatprep.subr.mxu0 %v505
        %704 = vmatpush1.msra.mxu0 %v504
        %705 = vmatprep.subr.mxu0 %v507
        %706 = vmatpush1.msra.mxu0 %v506
        %707 = vmatprep.subr.mxu0 %v509
        %708 = vmatpush1.msra.mxu0 %v508
        %709 = vmatprep.subr.mxu0 %v511
        %710 = vmatpush1.msra.mxu0 %v510
        %711 = vmatprep.subr.mxu0 %v513
        %712 = vmatpush1.msra.mxu0 %v512
        %713 = vmatprep.subr.mxu0 %v515
        %714 = vmatpush1.msra.mxu0 %v514
        %715 = vmatprep.subr.mxu0 %v517
        %716 = vmatpush1.msra.mxu0 %v516
        %717 = vmatprep.subr.mxu0 %v519
        %718 = vmatpush1.msra.mxu0 %v518
        %719 = vmatprep.subr.mxu0 %v521
        %720 = vmatpush1.msra.mxu0 %v520
        %721 = vmatprep.subr.mxu0 %v523
        %722 = vmatpush1.msra.mxu0 %v522
        %723 = vmatprep.subr.mxu0 %v525
        %724 = vmatpush1.msra.mxu0 %v524
        %725 = vmatprep.subr.mxu0 %v527
        %726 = vmatpush1.msra.mxu0 %v526
        %727 = vmatprep.subr.mxu0 %v529
        %728 = vmatpush1.msra.mxu0 %v528
        %729 = vmatprep.mubr.f32.mxu0 %v451
        %730 = vmatmul.mubr.f32.gmra.mrb[0].mxu0 %v444
        %v731 = vpop.f32.mrb[0].mxu0
        %v732 = vadd.f32 %v661, %v731
        %v733 = vpop.f32.mrb[0].mxu0
        %v734 = vadd.f32 %v663, %v733
        %735 = vdwg.mxu0
        %s736 = sld [smem:[#allocation2]]
        %v737 = vstv %s736
        %v738 = vadd.f32 %v732, %v737
        %v739 = vadd.f32 %v734, %v737
        %v740 = vxor.u32 %v738, 2147483648
        %v741 = vxor.u32 %v739, 2147483648
        %v742 = vmul.f32 %v740, 1.442695
        %v743 = vpow.pop %v742
        %v744 = vmul.f32 %v741, 1.442695
        %v745 = vpow.pop %v744
        %v746 = vadd.f32 %v743, 1.0
        %v747 = vadd.f32 %v745, 1.0
        %v748 = vrcp.pop %v746
        %v749 = vmul.f32 1.0, %v748
        %v750 = vrcp.pop %v747
        %v751 = vmul.f32 1.0, %v750
        %v752 = vlaneseq
        %v753 = vshrl.u32 %v752, 7
        %v754 = vsub.s32 0, %v753
        %v755 = vrot.slane %v749, %v754
        %v756 = vlaneseq
        %v757 = vshrl.u32 %v756, 7
        %v758 = vsub.s32 0, %v757
        %v759 = vrot.slane %v751, %v758
        %v760 = vmul.f32 %v435, %v755
        %v761 = vmul.f32 %v436, %v759
        %763 = vset.pattern.permute.xlu0 0
        %764 = vperm.xlu0 %763, %v343
        %v765 = vpop.permute.xlu0 %764
        %768 = vset.pattern.permute.xlu0 0
        %769 = vperm.xlu0 %768, %v344
        %v770 = vpop.permute.xlu0 %769
        %773 = vset.pattern.permute.xlu0 0
        %774 = vperm.xlu0 %773, %v345
        %v775 = vpop.permute.xlu0 %774
        %778 = vset.pattern.permute.xlu0 0
        %779 = vperm.xlu0 %778, %v346
        %v780 = vpop.permute.xlu0 %779
        %vm782 = vcmask 15360
        %v784 = vsel %vm782, %v339, 0
        %v787 = vsel %vm782, %v340, 0
        %v790 = vsel %vm782, %v341, 0
        %v793 = vsel %vm782, %v342, 0
        %v796 = vsel %vm437, %v760, 0
        %v799 = vsel %vm437, %v761, 0
        %801 = vmatprep.subr.mxu0 %v799
        %802 = vmatpush1.msra.mxu0 %v796
        %803 = vmatprep.subr.mxu0 0.0
        %804 = vmatpush1.msra.mxu0 0.0
        %805 = vmatprep.subr.mxu0 0.0
        %806 = vmatpush1.msra.mxu0 0.0
        %807 = vmatprep.subr.mxu0 0.0
        %808 = vmatpush1.msra.mxu0 0.0
        %809 = vmatprep.subr.mxu0 0.0
        %810 = vmatpush1.msra.mxu0 0.0
        %811 = vmatprep.subr.mxu0 0.0
        %812 = vmatpush1.msra.mxu0 0.0
        %813 = vmatprep.subr.mxu0 0.0
        %814 = vmatpush1.msra.mxu0 0.0
        %815 = vmatprep.subr.mxu0 0.0
        %816 = vmatpush1.msra.mxu0 0.0
        %817 = vmatprep.subr.mxu0 0.0
        %818 = vmatpush1.msra.mxu0 0.0
        %819 = vmatprep.subr.mxu0 0.0
        %820 = vmatpush1.msra.mxu0 0.0
        %821 = vmatprep.subr.mxu0 0.0
        %822 = vmatpush1.msra.mxu0 0.0
        %823 = vmatprep.subr.mxu0 0.0
        %824 = vmatpush1.msra.mxu0 0.0
        %825 = vmatprep.subr.mxu0 0.0
        %826 = vmatpush1.msra.mxu0 0.0
        %827 = vmatprep.subr.mxu0 0.0
        %828 = vmatpush1.msra.mxu0 0.0
        %829 = vmatprep.subr.mxu0 0.0
        %830 = vmatpush1.msra.mxu0 0.0
        %831 = vmatprep.subr.mxu0 0.0
        %832 = vmatpush1.msra.mxu0 0.0
        %833 = vmatprep.subr.mxu0 0.0
        %834 = vmatpush1.msra.mxu0 0.0
        %835 = vmatprep.subr.mxu0 0.0
        %836 = vmatpush1.msra.mxu0 0.0
        %837 = vmatprep.subr.mxu0 0.0
        %838 = vmatpush1.msra.mxu0 0.0
        %839 = vmatprep.subr.mxu0 0.0
        %840 = vmatpush1.msra.mxu0 0.0
        %841 = vmatprep.subr.mxu0 0.0
        %842 = vmatpush1.msra.mxu0 0.0
        %843 = vmatprep.subr.mxu0 0.0
        %844 = vmatpush1.msra.mxu0 0.0
        %845 = vmatprep.subr.mxu0 0.0
        %846 = vmatpush1.msra.mxu0 0.0
        %847 = vmatprep.subr.mxu0 0.0
        %848 = vmatpush1.msra.mxu0 0.0
        %849 = vmatprep.subr.mxu0 0.0
        %850 = vmatpush1.msra.mxu0 0.0
        %851 = vmatprep.subr.mxu0 0.0
        %852 = vmatpush1.msra.mxu0 0.0
        %853 = vmatprep.subr.mxu0 0.0
        %854 = vmatpush1.msra.mxu0 0.0
        %855 = vmatprep.subr.mxu0 0.0
        %856 = vmatpush1.msra.mxu0 0.0
        %857 = vmatprep.subr.mxu0 0.0
        %858 = vmatpush1.msra.mxu0 0.0
        %859 = vmatprep.subr.mxu0 0.0
        %860 = vmatpush1.msra.mxu0 0.0
        %861 = vmatprep.subr.mxu0 0.0
        %862 = vmatpush1.msra.mxu0 0.0
        %863 = vmatprep.subr.mxu0 0.0
        %864 = vmatpush1.msra.mxu0 0.0
        %865 = vmatprep.mubr.f32.mxu0 0.0
        %866 = vmatmul.mubr.f32.gmra.mrb[0].mxu0 %v784
        %v867 = vpop.f32.mrb[0].mxu0
        %v868 = vadd.f32 %v765, %v867
        %v869 = vpop.f32.mrb[0].mxu0
        %v870 = vadd.f32 %v765, %v869
        %871 = vmatprep.mubr.f32.mxu0 0.0
        %872 = vmatmul.mubr.f32.gmra.mrb[0].mxu0 %v787
        %v873 = vpop.f32.mrb[0].mxu0
        %v874 = vadd.f32 %v770, %v873
        %v875 = vpop.f32.mrb[0].mxu0
        %v876 = vadd.f32 %v770, %v875
        %877 = vmatprep.mubr.f32.mxu0 0.0
        %878 = vmatmul.mubr.f32.gmra.mrb[0].mxu0 %v790
        %v879 = vpop.f32.mrb[0].mxu0
        %v880 = vadd.f32 %v775, %v879
        %v881 = vpop.f32.mrb[0].mxu0
        %v882 = vadd.f32 %v775, %v881
        %883 = vmatprep.mubr.f32.mxu0 0.0
        %884 = vmatmul.mubr.f32.gmra.mrb[0].mxu0 %v793
        %v885 = vpop.f32.mrb[0].mxu0
        %v886 = vadd.f32 %v780, %v885
        %v887 = vpop.f32.mrb[0].mxu0
        %v888 = vadd.f32 %v780, %v887
        %889 = vdwg.mxu0
        %v890 = vxor.u32 %v868, 2147483648
        %v891 = vxor.u32 %v870, 2147483648
        %v892 = vxor.u32 %v874, 2147483648
        %v893 = vxor.u32 %v876, 2147483648
        %v894 = vxor.u32 %v880, 2147483648
        %v895 = vxor.u32 %v882, 2147483648
        %v896 = vxor.u32 %v886, 2147483648
        %v897 = vxor.u32 %v888, 2147483648
        %v898 = vmul.f32 %v890, 1.442695
        %v899 = vpow.pop %v898
        %v900 = vmul.f32 %v891, 1.442695
        %v901 = vpow.pop %v900
        %v902 = vmul.f32 %v892, 1.442695
        %v903 = vpow.pop %v902
        %v904 = vmul.f32 %v893, 1.442695
        %v905 = vpow.pop %v904
        %v906 = vmul.f32 %v894, 1.442695
        %v907 = vpow.pop %v906
        %v908 = vmul.f32 %v895, 1.442695
        %v909 = vpow.pop %v908
        %v910 = vmul.f32 %v896, 1.442695
        %v911 = vpow.pop %v910
        %v912 = vmul.f32 %v897, 1.442695
        %v913 = vpow.pop %v912
        %v914 = vadd.f32 %v899, 1.0
        %v915 = vadd.f32 %v901, 1.0
        %v916 = vadd.f32 %v903, 1.0
        %v917 = vadd.f32 %v905, 1.0
        %v918 = vadd.f32 %v907, 1.0
        %v919 = vadd.f32 %v909, 1.0
        %v920 = vadd.f32 %v911, 1.0
        %v921 = vadd.f32 %v913, 1.0
        %v922 = vrcp.pop %v914
        %v923 = vmul.f32 1.0, %v922
        %v924 = vrcp.pop %v915
        %v925 = vmul.f32 1.0, %v924
        %v926 = vrcp.pop %v916
        %v927 = vmul.f32 1.0, %v926
        %v928 = vrcp.pop %v917
        %v929 = vmul.f32 1.0, %v928
        %v930 = vrcp.pop %v918
        %v931 = vmul.f32 1.0, %v930
        %v932 = vrcp.pop %v919
        %v933 = vmul.f32 1.0, %v932
        %v934 = vrcp.pop %v920
        %v935 = vmul.f32 1.0, %v934
        %v936 = vrcp.pop %v921
        %v937 = vmul.f32 1.0, %v936
        %v938 = vmul.f32 %v347, %v923
        %v939 = vmul.f32 %v348, %v925
        %v940 = vmul.f32 %v349, %v927
        %v941 = vmul.f32 %v350, %v929
        %v942 = vmul.f32 %v351, %v931
        %v943 = vmul.f32 %v352, %v933
        %v944 = vmul.f32 %v353, %v935
        %v945 = vmul.f32 %v354, %v937
        %946 = vst [vmem:[%s336] sm:$0xff] %v938
        %947 = vst [vmem:[%s336 + $0x8] sm:$0xff] %v939
        %948 = vst [vmem:[%s336 + $0x10] sm:$0xff] %v940
        %949 = vst [vmem:[%s336 + $0x18] sm:$0xff] %v941
        %950 = vst [vmem:[%s336 + $0x20] sm:$0xff] %v942
        %951 = vst [vmem:[%s336 + $0x28] sm:$0xff] %v943
        %952 = vst [vmem:[%s336 + $0x30] sm:$0xff] %v944
        %953 = vst [vmem:[%s336 + $0x38] sm:$0xff] %v945
        %p954 = scmp.lt.s32.totalorder %s22, 1
        %s955 = scalar_select %p954, %s22, 1
        %s956 = smul.addr %s955, 8
        %s957 = smul.addr %s956, 8
        %s958 = scalar_lea.vmem %s8, %s957
        // Predicated region
        $region61: #{ela_forward.1} parent=51 // pred_check
          %p959 = pneg %p213
        $region62: #{ela_forward.1} parent=51 // pred_check_branch
          %961 = sbr.rel (%p959) target = $region64
        $region63: #{ela_forward.1} parent=51 // pred_region
          _
        $region64: #{ela_forward.1} parent=51 // pred_fallthru
          _
      $region52: #{ela_forward.1} parent=5 // pred_fallthru
        _
      %p962 = scmp.le.s32.totalorder 2, %s17
      // Predicated region
      $region65: #{ela_forward.1} parent=5 // pred_check
        %p963 = pneg %p962
      $region66: #{ela_forward.1} parent=5 // pred_check_branch
        %965 = sbr.rel (%p963) target = $region68
      $region67: #{ela_forward.1} parent=5 // pred_region
        %s966 = ssub.s32 %s17, 2
        // Predicated region
        $region69: #{ela_forward.1} parent=67 // pred_check
          %p967 = pneg %p219
        $region70: #{ela_forward.1} parent=67 // pred_check_branch
          %969 = sbr.rel (%p967) target = $region72
        $region71: #{ela_forward.1} parent=67 // pred_region
          %p970 = scmp.lt.s32.totalorder %s23, 1
          %s971 = scalar_select %p970, %s23, 1
          %s972 = smul.addr %s971, 8
          %s973 = smul.addr %s972, 8
          %s974 = scalar_lea.vmem %s8, %s973
        $region72: #{ela_forward.1} parent=67 // pred_fallthru
          _
      $region68: #{ela_forward.1} parent=5 // pred_fallthru
        _
    $region6: #{ela_forward.1} parent=1 // loop_footer
      %s21 = sadd.s32 1, %s17
    $region7: #{ela_forward.1} parent=1 // loop_footer_branch
      %16 = sbr.rel target = $region3
    $region8: #{ela_forward.1} parent=1 // loop_exit
      _
    %975 = vsyncpa [#allocation4], 1
    %s976 = scalar_lea.sflag [#allocation4], 1
    %977 = vsyncpa %s976, 1
    %978 = vsyncpa [#allocation6], 1

</llo_original>
